<compile_context>
chip_gen: v5e
topology: v5e:2x2
jax: 0.10.0
libtpu: 0.0.40
codegen_flags: <defaults>
</compile_context>

<pallas_src>
import jax
import jax.numpy as jnp
from jax.experimental import pallas as pl
from jax.experimental.pallas import tpu as pltpu


def _h_swish_kernel(x_ref, o_ref):
    x = x_ref[...]
    # h_sigmoid(x) = relu6(x + 3) / 6 = clip(x + 3, 0, 6) * (1/6)   (pure VPU)
    o_ref[...] = x * (jnp.clip(x + 3.0, 0.0, 6.0) * (1.0 / 6.0))


_LANE_CANDIDATES = (1024, 512, 256, 128)
_TARGET_BLOCK_BYTES = 2 * 1024 * 1024  # ~2 MiB/block -> ~8 MiB with in+out double-buffered


def _layout(n):
    """Pick (cols, rows, padded_n) for a lane-dense 2-D view of the flat array."""
    for cols in _LANE_CANDIDATES:
        if n % cols == 0:
            return cols, n // cols, n              # free reshape, no padding
    # Rare fallback: n not a multiple of 128 -> pad the flat array (full copy).
    cols = 1024
    padded_n = pl.cdiv(n, cols) * cols
    return cols, padded_n // cols, padded_n


@jax.jit
def h_swish(x):
    """Elementwise h_swish(x) = x * relu6(x + 3) / 6 via a single Pallas kernel."""
    orig_shape, dtype = x.shape, x.dtype
    n = x.size
    if n == 0:
        return x

    cols, rows, padded_n = _layout(n)
    flat = jnp.ravel(x)
    if padded_n != n:                              # static (trace-time) branch; rare
        flat = jnp.pad(flat, (0, padded_n - n))
    x2d = flat.reshape(rows, cols)

    # Row tile: whole array if small (block dim == full dim is always legal),
    # otherwise the largest multiple of 8 that keeps the block ~2 MiB.
    itemsize = jnp.dtype(dtype).itemsize
    tr_cap = max(8, (_TARGET_BLOCK_BYTES // (cols * itemsize)) // 8 * 8)
    tr = rows if rows <= tr_cap else tr_cap
    grid = (pl.cdiv(rows, tr),)                    # ragged last block masked by Pallas

    out = pl.pallas_call(
        _h_swish_kernel,
        out_shape=jax.ShapeDtypeStruct((rows, cols), dtype),
        grid=grid,
        in_specs=[pl.BlockSpec((tr, cols), lambda i: (i, 0))],
        out_specs=pl.BlockSpec((tr, cols), lambda i: (i, 0)),
        compiler_params=pltpu.CompilerParams(
            dimension_semantics=("parallel",)),
    )(x2d)

    flat_out = jnp.ravel(out)
    if padded_n != n:
        flat_out = flat_out[:n]
    return flat_out.reshape(orig_shape)


def _reference(x):
    # Pure-JAX reference: x * relu6(x + 3) / 6
    return x * (jnp.clip(x + 3.0, 0.0, 6.0) / 6.0)


if __name__ == "__main__":
    key = jax.random.PRNGKey(0)

    # Small NCHW input, consistent with how h_swish is used inside the model.
    B, C, H, W = 2, 4, 16, 16
    x = jax.random.normal(key, (B, C, H, W), jnp.float32) * 4.0  # spans both clip edges

    y = h_swish(x)
    jax.block_until_ready(y)
    y_ref = _reference(x)
    assert y.shape == x.shape and y.dtype == x.dtype
    assert jnp.allclose(y, y_ref, atol=1e-6, rtol=1e-6)

    # Exercise the non-128-divisible fallback path too.
    x_odd = jax.random.normal(jax.random.PRNGKey(1), (3, 5, 7), jnp.float32) * 4.0
    y_odd = h_swish(x_odd)
    jax.block_until_ready(y_odd)
    assert jnp.allclose(y_odd, _reference(x_odd), atol=1e-6, rtol=1e-6)

    print("KERNEL_OK")
</pallas_src>

<mosaic_0001>
module attributes {stable_mosaic.version = 11 : i64} {
  func.func @_h_swish_kernel(%arg0: i32, %arg1: memref<2x1024xf32, #tpu.memory_space<vmem>>, %arg2: memref<2x1024xf32, #tpu.memory_space<vmem>>) attributes {dimension_semantics = [#tpu.dimension_semantics<parallel>], iteration_bounds = array<i64: 1>, scalar_prefetch = 0 : i64, scratch_operands = 0 : i64, tpu.core_type = #tpu.core_type<tc>, window_params = [{transform_indices = @transform_0, window_bounds = array<i64: 2, 1024>}, {transform_indices = @transform_1, window_bounds = array<i64: 2, 1024>}]} {
    %c0 = arith.constant 0 : index
    %c0_0 = arith.constant 0 : index
    %0 = vector.load %arg1[%c0, %c0_0] : memref<2x1024xf32, #tpu.memory_space<vmem>>, vector<2x1024xf32>
    %cst = arith.constant 3.000000e+00 : f32
    %1 = vector.broadcast %cst : f32 to vector<2x1024xf32>
    %2 = arith.addf %0, %1 : vector<2x1024xf32>
    %cst_1 = arith.constant 0.000000e+00 : f32
    %cst_2 = arith.constant 6.000000e+00 : f32
    %3 = vector.broadcast %cst_1 : f32 to vector<2x1024xf32>
    %4 = arith.maximumf %3, %2 : vector<2x1024xf32>
    %5 = vector.broadcast %cst_2 : f32 to vector<2x1024xf32>
    %6 = arith.minimumf %5, %4 : vector<2x1024xf32>
    %cst_3 = arith.constant 0.166666672 : f32
    %7 = vector.broadcast %cst_3 : f32 to vector<2x1024xf32>
    %8 = arith.mulf %6, %7 : vector<2x1024xf32>
    %9 = arith.mulf %0, %8 : vector<2x1024xf32>
    %c0_4 = arith.constant 0 : index
    %c0_5 = arith.constant 0 : index
    %10 = vector.load %arg2[%c0_4, %c0_5] : memref<2x1024xf32, #tpu.memory_space<vmem>>, vector<2x1024xf32>
    tpu.vector_store %arg2[%c0_4, %c0_5], %9 {strides = array<i32>} : memref<2x1024xf32, #tpu.memory_space<vmem>>, vector<2x1024xf32>,
    return
  }
  func.func @transform_0(%arg0: i32) -> (i32, i32) {
    %c0_i32 = arith.constant 0 : i32
    %c0_i32_0 = arith.constant 0 : i32
    return %arg0, %c0_i32 : i32, i32
  }
  func.func @transform_1(%arg0: i32) -> (i32, i32) {
    %c0_i32 = arith.constant 0 : i32
    %c0_i32_0 = arith.constant 0 : i32
    return %arg0, %c0_i32 : i32, i32
  }
}

</mosaic_0001>

<llo_original>
// kernel: h_swish.1
$region0: #{h_swish.1}
  #allocation0 [shape = 'u32[]', space=smem, size = 0x4, offset = 0x4, fixed_abs, tag = 'smem constant byte address 0x4 - core index']
  #allocation1 [shape = 'u32[72,128]{1,0:T(1,128)}', space=vmem, size = 0x9000, scoped, tag = 'internal scratch']
  %s0 = inlined_call_operand.vmem [shape: f32[2,1024], index: 0, kind: input, shape index: {}]
  %s1 = inlined_call_operand.vmem [shape: f32[2,1024], index: 1, kind: output, shape index: {}]
  %s2 = sld [smem:[#allocation0]]
  $region14: #{h_swish.1} parent=0
    _
  %s4 = ssub.s32 1, %s2
  %s5 = scalar_select 0, %s4, %s2
  // Predicated region
  $region2: #{h_swish.1} parent=0 // pred_check
    _
  $region3: #{h_swish.1} parent=0 // pred_check_branch
    %7 = sbr.rel (0) target = $region5
  $region4: #{h_swish.1} parent=0 // pred_region
    _
  $region5: #{h_swish.1} parent=0 // pred_fallthru
    _
  %v8 = vld [vmem:[%s0] sm:$0xff]
  %v9 = vld [vmem:[%s0 + $0x8] sm:$0xff]
  %v10 = vadd.f32 %v8, 3.0
  %v11 = vadd.f32 %v9, 3.0
  %v12 = vmax.f32 %v10, 0.0
  %v13 = vmax.f32 %v11, 0.0
  %v14 = vmin.f32 %v12, 6.0
  %v15 = vmin.f32 %v13, 6.0
  %v16 = vmul.f32 %v14, 0.16666667
  %v17 = vmul.f32 %v15, 0.16666667
  %v18 = vmul.f32 %v8, %v16
  %v19 = vmul.f32 %v9, %v17
  %20 = vst [vmem:[%s1] sm:$0xff] %v18
  %21 = vst [vmem:[%s1 + $0x8] sm:$0xff] %v19
  // Predicated region
  $region6: #{h_swish.1} parent=0 // pred_check
    _
  $region7: #{h_swish.1} parent=0 // pred_check_branch
    %23 = sbr.rel (0) target = $region9
  $region8: #{h_swish.1} parent=0 // pred_region
    _
  $region9: #{h_swish.1} parent=0 // pred_fallthru
    _
  // Predicated region
  $region10: #{h_swish.1} parent=0 // pred_check
    _
  $region11: #{h_swish.1} parent=0 // pred_check_branch
    %25 = sbr.rel (0) target = $region13
  $region12: #{h_swish.1} parent=0 // pred_region
    _
  $region13: #{h_swish.1} parent=0 // pred_fallthru
    _

</llo_original>
